<compile_context>
chip_gen: v7x
topology: tpu7x:2x2x1
jax: 0.10.0
libtpu: 0.0.40
codegen_flags: <defaults>
</compile_context>

<pallas_src>
import math
import functools

import jax
import jax.numpy as jnp
from jax.experimental import pallas as pl
from jax.experimental.pallas import tpu as pltpu


# params columns (per image, f32):
#   0: x0_1  1: y0_1  2: a1  3: b1  4: c1  5: span1  6: off1   (background added to input)
#   7: x0_2  8: y0_2  9: a2 10: b2 11: c2 12: span2 13: off2   (read-noise bg_std, sigma folded in)
#  14: baseline (batch-global scalar, replicated)  15: pad
_NPARAMS = 16


def _noise_kernel(params_ref, x_ref, zp_ref, zr_ref, o_ref, *, H, W, HW_real):
    TB, HWp = x_ref.shape
    p = params_ref[...]                                     # (TB, 16)

    # ---- coordinate fields: lane-only, (1, HWp), broadcast against rows for free -------
    lane = jax.lax.broadcasted_iota(jnp.int32, (1, HWp), 1).astype(jnp.float32)
    # row = lane // W, col = lane % W  (float trick, exact for H*W < ~4e6)
    row = jnp.floor((lane + 0.5) * (1.0 / W))
    col = lane - row * W
    X = col - (W - 1.0) / 2.0
    Y = row - (H - 1.0) / 2.0

    if HWp != HW_real:   # lane padding present -> mask padded lanes out of the reductions
        valid = jax.lax.broadcasted_iota(jnp.int32, (1, HWp), 1) < HW_real
    else:
        valid = None

    # ---- per-image non-uniform background: (h - min) * (span / (max - min)) + off -------
    def bg_field(c0):
        x0 = p[:, c0 + 0:c0 + 1]
        y0 = p[:, c0 + 1:c0 + 2]
        a = p[:, c0 + 2:c0 + 3]
        b = p[:, c0 + 3:c0 + 4]
        c = p[:, c0 + 4:c0 + 5]
        span = p[:, c0 + 5:c0 + 6]
        off = p[:, c0 + 6:c0 + 7]
        dx = X - x0                                        # (TB, HWp) via broadcast
        dy = Y - y0
        q = a * dx * dx + 2.0 * b * dx * dy + c * dy * dy
        h = jnp.exp(-(q * q))
        hm = h if valid is None else jnp.where(valid, h, -jnp.inf)
        maxh = jnp.max(hm, axis=-1, keepdims=True)         # (TB, 1) per-image reductions
        h = jnp.where(h < 1e-6 * maxh, 0.0, h)
        hm = h if valid is None else jnp.where(valid, h, jnp.inf)
        minh = jnp.min(hm, axis=-1, keepdims=True)
        denom = maxh - minh
        # exact division; guard maxh == minh (padded rows; PyTorch reference would NaN here)
        scale = jnp.where(denom > 0.0, span / jnp.maximum(denom, 1e-30), 0.0)
        return (h - minh) * scale + off

    # NonUniformBg (or uniform bg folded into span/off on the host)
    inputb = x_ref[...] + bg_field(0)

    # poisson_noise_approx (learn_mask=True path); read noise only at point of use
    # TODO(synk): exact np.random.poisson sampling (learn_mask=False) has no Pallas equivalent.
    inputb = inputb + jnp.sqrt(inputb) * zp_ref[...]

    # ReadNoise (sigma range already folded into span2 / off2 on the host)
    bg_std = bg_field(7)
    baseline = p[:, 14:15]
    o_ref[...] = jnp.maximum(inputb + baseline + bg_std * zr_ref[...], 0.0)


def _gaussian_quad_coeffs(key, N, H, W, offX, offY, th_min, th_max, bmin, bmax):
    """Mirror the per-image torch.rand draws inside NonUniformBg.forward."""
    ks = jax.random.split(key, 7)
    u = lambda k: jax.random.uniform(k, (N,), dtype=jnp.float32)
    x0 = -offX + u(ks[0]) * (2.0 * offX)
    y0 = -offY + u(ks[1]) * (2.0 * offY)
    sigmax = W / 5.0 + u(ks[2]) * (W / 5.0)
    sigmay = H / 5.0 + u(ks[3]) * (H / 5.0)
    theta = th_min + u(ks[4]) * (th_max - th_min)
    a = jnp.cos(theta) ** 2 / (2 * sigmax ** 2) + jnp.sin(theta) ** 2 / (2 * sigmay ** 2)
    b = -jnp.sin(2 * theta) / (4 * sigmax ** 2) + jnp.sin(2 * theta) / (4 * sigmay ** 2)
    c = jnp.sin(theta) ** 2 / (2 * sigmax ** 2) + jnp.cos(theta) ** 2 / (2 * sigmay ** 2)
    bmin_i = bmin + u(ks[5]) * bmin / 2.0
    bmax_i = bmax + u(ks[6]) * bmax / 2.0
    return x0, y0, a, b, c, bmin_i, bmax_i


def noise_layer_forward(x_nchw, setup_params, key):
    """Fused Pallas forward for NoiseLayer (assumes batch_size_gen == N, as the torch code does)."""
    N, C, H, W = x_nchw.shape
    assert C == 1
    HW = H * W

    learn_mask = setup_params.get("learn_mask", True)
    nonunif_bg_flag = setup_params.get("nonunif_bg_flag", True)
    read_noise_flag = setup_params.get("read_noise_flag", True)
    std_nonunif = setup_params.get("read_noise_nonuinf", True)
    assert learn_mask, "learn_mask=False (exact numpy Poisson) not supported"   # TODO(synk)
    assert read_noise_flag, "read_noise_flag=False not supported"               # TODO(synk)

    k_bg1, k_bg2, k_base, k_zp, k_zr = jax.random.split(key, 5)

    sig_min, sig_max = setup_params["read_noise_std_range"]
    base_min, base_max = setup_params["read_noise_baseline_range"]
    offX, offY = setup_params["nonunif_bg_offset"]
    th_min, th_max = setup_params["nonunif_bg_theta_range"]

    zeros = jnp.zeros((N,), jnp.float32)

    # background #1: NonUniformBg applied to the input (or uniform bg)
    if nonunif_bg_flag:
        bmin, bmax = setup_params["nonunif_bg_minvals"]
        x0_1, y0_1, a1, b1, c1, bmin1, bmax1 = _gaussian_quad_coeffs(
            k_bg1, N, H, W, offX, offY, th_min, th_max, float(bmin), float(bmax))
        span1, off1 = bmax1 - bmin1, bmin1
    else:
        x0_1 = y0_1 = a1 = b1 = c1 = zeros
        span1 = zeros
        off1 = jnp.full((N,), float(setup_params["unif_bg"]), jnp.float32)

    # background #2: ReadNoise's internal NonUniformBg (minvals forced to [0, 1]),
    # with the sigma range folded in: bg_std = bg01 * (sig_max - sig_min) + sig_min
    if std_nonunif:
        x0_2, y0_2, a2, b2, c2, bmin2, bmax2 = _gaussian_quad_coeffs(
            k_bg2, N, H, W, offX, offY, th_min, th_max, 0.0, 1.0)
        span2 = (bmax2 - bmin2) * (sig_max - sig_min)
        off2 = bmin2 * (sig_max - sig_min) + sig_min
    else:
        x0_2 = y0_2 = a2 = b2 = c2 = zeros
        span2 = zeros
        off2 = jnp.full((N,), float(sig_max), jnp.float32)   # ones*(max-min)+min

    baseline = (jax.random.uniform(k_base, (), dtype=jnp.float32)
                * (base_max - base_min) + base_min)           # single torch.rand(1) draw

    params = jnp.stack(
        [x0_1, y0_1, a1, b1, c1, span1, off1,
         x0_2, y0_2, a2, b2, c2, span2, off2,
         jnp.broadcast_to(baseline, (N,)), zeros], axis=1).astype(jnp.float32)   # (N, 16)

    # lane-dense layout: each image is one row of H*W lanes, padded to a multiple of 128
    HWp = ((HW + 127) // 128) * 128
    x = x_nchw.reshape(N, HW).astype(jnp.float32)
    # TODO(synk): if the upstream tensor is bf16 (v5e mem-bound case), pass it through as bf16
    #             and upcast in-kernel instead of the host-side astype.
    if HWp != HW:
        x = jnp.pad(x, ((0, 0), (0, HWp - HW)))

    # rows per grid step: budget ~96 B/elem (x + 2 noise + out double-buffered plus ~16 live
    # f32 temporaries inside the fused body); fits v5e's 16 MiB default scoped VMEM w/ headroom.
    BYTES_PER_ELEM = 96
    VMEM_BUDGET = 12 * 1024 * 1024
    tb_cap = VMEM_BUDGET // (BYTES_PER_ELEM * HWp)
    tb_cap = max(8, min(1024, (tb_cap // 8) * 8))
    n8 = ((N + 7) // 8) * 8
    if n8 >= 16:
        # keep the grid >= 2 so dimension_semantics=("parallel",) can shard across v7x's two TCs
        tb_cap = min(tb_cap, max(8, (n8 // 16) * 8))
    tb = min(tb_cap, n8)
    n_pad = ((N + tb - 1) // tb) * tb
    if n_pad != N:
        x = jnp.pad(x, ((0, n_pad - N), (0, 0)))
        params = jnp.pad(params, ((0, n_pad - N), (0, 0)))    # zero params are NaN-safe

    # host-drawn standard-normal fields (kernel-side TPU PRNG has no interpret/CPU lowering)
    z_poiss = jax.random.normal(k_zp, (n_pad, HWp), dtype=jnp.float32)
    z_read = jax.random.normal(k_zr, (n_pad, HWp), dtype=jnp.float32)

    # scoped-VMEM limit from the actual estimate (I/O double-buffers + live temporaries)
    est_bytes = tb * HWp * 4 * (4 * 2 + 16) + 2 * tb * _NPARAMS * 4
    vmem_limit = int(min(48 * 1024 * 1024, max(16 * 1024 * 1024, est_bytes * 5 // 4)))

    out = pl.pallas_call(
        functools.partial(_noise_kernel, H=H, W=W, HW_real=HW),
        out_shape=jax.ShapeDtypeStruct((n_pad, HWp), jnp.float32),
        grid=(n_pad // tb,),
        in_specs=[
            pl.BlockSpec((tb, _NPARAMS), lambda i: (i, 0)),   # per-image scalars (VMEM)
            pl.BlockSpec((tb, HWp), lambda i: (i, 0)),        # input images
            pl.BlockSpec((tb, HWp), lambda i: (i, 0)),        # poisson-approx normals
            pl.BlockSpec((tb, HWp), lambda i: (i, 0)),        # read-noise normals
        ],
        out_specs=pl.BlockSpec((tb, HWp), lambda i: (i, 0)),
        compiler_params=pltpu.CompilerParams(
            dimension_semantics=("parallel",),                # independent images -> both TCs on v7x
            vmem_limit_bytes=vmem_limit),
    )(params, x, z_poiss, z_read)

    return out[:N, :HW].reshape(N, 1, H, W)


if __name__ == "__main__":
    setup_params = {
        "batch_size_gen": 2,
        "H": 16,
        "W": 16,
        "learn_mask": True,
        "nonunif_bg_flag": True,
        "read_noise_flag": True,
        "read_noise_nonuinf": True,
        "unif_bg": 0.0,
        "read_noise_std_range": [2.0, 5.0],
        "read_noise_baseline_range": [50.0, 100.0],
        "nonunif_bg_offset": [5.0, 5.0],
        "nonunif_bg_theta_range": [0.0, math.pi / 2],
        "nonunif_bg_minvals": [10.0, 50.0],
        "device": None,
    }

    key = jax.random.PRNGKey(0)
    k_in, k_noise = jax.random.split(key)
    x = jax.random.uniform(k_in, (2, 1, 16, 16), dtype=jnp.float32) * 100.0

    out = noise_layer_forward(x, setup_params, k_noise)
    out = jax.block_until_ready(out)

    assert out.shape == (2, 1, 16, 16)
    assert out.dtype == jnp.float32
    assert bool(jnp.all(jnp.isfinite(out)))
    assert bool(jnp.all(out >= 0.0))
    print("KERNEL_OK")
</pallas_src>

<mosaic_0001>
module attributes {stable_mosaic.version = 11 : i64} {
  func.func @_noise_kernel(%arg0: i32, %arg1: memref<8x16xf32, #tpu.memory_space<vmem>>, %arg2: memref<8x256xf32, #tpu.memory_space<vmem>>, %arg3: memref<8x256xf32, #tpu.memory_space<vmem>>, %arg4: memref<8x256xf32, #tpu.memory_space<vmem>>, %arg5: memref<8x256xf32, #tpu.memory_space<vmem>>) attributes {dimension_semantics = [#tpu.dimension_semantics<parallel>], iteration_bounds = array<i64: 1>, scalar_prefetch = 0 : i64, scratch_operands = 0 : i64, tpu.core_type = #tpu.core_type<tc>, window_params = [{transform_indices = @transform_0, window_bounds = array<i64: 8, 16>}, {transform_indices = @transform_1, window_bounds = array<i64: 8, 256>}, {transform_indices = @transform_2, window_bounds = array<i64: 8, 256>}, {transform_indices = @transform_3, window_bounds = array<i64: 8, 256>}, {transform_indices = @transform_4, window_bounds = array<i64: 8, 256>}]} {
    %c0 = arith.constant 0 : index
    %c0_0 = arith.constant 0 : index
    %0 = vector.load %arg1[%c0, %c0_0] : memref<8x16xf32, #tpu.memory_space<vmem>>, vector<8x16xf32>
    %1 = tpu.iota {dimensions = array<i32: 1>} : vector<1x256xi32>
    %2 = arith.sitofp %1 : vector<1x256xi32> to vector<1x256xf32>
    %cst = arith.constant 5.000000e-01 : f32
    %3 = vector.broadcast %cst : f32 to vector<1x256xf32>
    %4 = arith.addf %2, %3 : vector<1x256xf32>
    %cst_1 = arith.constant 6.250000e-02 : f32
    %5 = vector.broadcast %cst_1 : f32 to vector<1x256xf32>
    %6 = arith.mulf %4, %5 : vector<1x256xf32>
    %7 = math.floor %6 : vector<1x256xf32>
    %cst_2 = arith.constant 1.600000e+01 : f32
    %8 = vector.broadcast %cst_2 : f32 to vector<1x256xf32>
    %9 = arith.mulf %7, %8 : vector<1x256xf32>
    %10 = arith.subf %2, %9 : vector<1x256xf32>
    %cst_3 = arith.constant 7.500000e+00 : f32
    %11 = vector.broadcast %cst_3 : f32 to vector<1x256xf32>
    %12 = arith.subf %10, %11 : vector<1x256xf32>
    %cst_4 = arith.constant 7.500000e+00 : f32
    %13 = vector.broadcast %cst_4 : f32 to vector<1x256xf32>
    %14 = arith.subf %7, %13 : vector<1x256xf32>
    %c0_5 = arith.constant 0 : index
    %c0_6 = arith.constant 0 : index
    %15 = vector.load %arg2[%c0_5, %c0_6] : memref<8x256xf32, #tpu.memory_space<vmem>>, vector<8x256xf32>
    %16 = vector.extract_strided_slice %0 {offsets = [0, 0], sizes = [8, 1], strides = [1, 1]} : vector<8x16xf32> to vector<8x1xf32>
    %17 = vector.extract_strided_slice %0 {offsets = [0, 1], sizes = [8, 1], strides = [1, 1]} : vector<8x16xf32> to vector<8x1xf32>
    %18 = vector.extract_strided_slice %0 {offsets = [0, 2], sizes = [8, 1], strides = [1, 1]} : vector<8x16xf32> to vector<8x1xf32>
    %19 = vector.extract_strided_slice %0 {offsets = [0, 3], sizes = [8, 1], strides = [1, 1]} : vector<8x16xf32> to vector<8x1xf32>
    %20 = vector.extract_strided_slice %0 {offsets = [0, 4], sizes = [8, 1], strides = [1, 1]} : vector<8x16xf32> to vector<8x1xf32>
    %21 = vector.extract_strided_slice %0 {offsets = [0, 5], sizes = [8, 1], strides = [1, 1]} : vector<8x16xf32> to vector<8x1xf32>
    %22 = vector.extract_strided_slice %0 {offsets = [0, 6], sizes = [8, 1], strides = [1, 1]} : vector<8x16xf32> to vector<8x1xf32>
    %23 = vector.broadcast %12 : vector<1x256xf32> to vector<8x256xf32>
    %24 = vector.broadcast %16 : vector<8x1xf32> to vector<8x256xf32>
    %25 = arith.subf %23, %24 : vector<8x256xf32>
    %26 = vector.broadcast %14 : vector<1x256xf32> to vector<8x256xf32>
    %27 = vector.broadcast %17 : vector<8x1xf32> to vector<8x256xf32>
    %28 = arith.subf %26, %27 : vector<8x256xf32>
    %29 = vector.broadcast %18 : vector<8x1xf32> to vector<8x256xf32>
    %30 = arith.mulf %29, %25 : vector<8x256xf32>
    %31 = arith.mulf %30, %25 : vector<8x256xf32>
    %cst_7 = arith.constant 2.000000e+00 : f32
    %32 = vector.broadcast %cst_7 : f32 to vector<8x1xf32>
    %33 = arith.mulf %32, %19 : vector<8x1xf32>
    %34 = vector.broadcast %33 : vector<8x1xf32> to vector<8x256xf32>
    %35 = arith.mulf %34, %25 : vector<8x256xf32>
    %36 = arith.mulf %35, %28 : vector<8x256xf32>
    %37 = arith.addf %31, %36 : vector<8x256xf32>
    %38 = vector.broadcast %20 : vector<8x1xf32> to vector<8x256xf32>
    %39 = arith.mulf %38, %28 : vector<8x256xf32>
    %40 = arith.mulf %39, %28 : vector<8x256xf32>
    %41 = arith.addf %37, %40 : vector<8x256xf32>
    %42 = arith.mulf %41, %41 : vector<8x256xf32>
    %cst_8 = arith.constant 0.000000e+00 : f32
    %43 = vector.broadcast %cst_8 : f32 to vector<8x256xf32>
    %44 = arith.subf %43, %42 : vector<8x256xf32>
    %45 = math.exp %44 : vector<8x256xf32>
    %cst_9 = arith.constant dense<0xFF800000> : vector<8xf32>
    %46 = vector.multi_reduction <maximumf>, %45, %cst_9 [1] : vector<8x256xf32> to vector<8xf32>
    %47 = vector.shape_cast %46 : vector<8xf32> to vector<8x1xf32>
    %cst_10 = arith.constant 9.99999997E-7 : f32
    %48 = vector.broadcast %cst_10 : f32 to vector<8x1xf32>
    %49 = arith.mulf %48, %47 : vector<8x1xf32>
    %50 = vector.broadcast %49 : vector<8x1xf32> to vector<8x256xf32>
    %51 = arith.cmpf olt, %45, %50 : vector<8x256xf32>
    %cst_11 = arith.constant 0.000000e+00 : f32
    %52 = vector.broadcast %cst_11 : f32 to vector<8x256xf32>
    %53 = arith.select %51, %52, %45 : vector<8x256xi1>, vector<8x256xf32>
    %cst_12 = arith.constant dense<0x7F800000> : vector<8xf32>
    %54 = vector.multi_reduction <minimumf>, %53, %cst_12 [1] : vector<8x256xf32> to vector<8xf32>
    %55 = vector.shape_cast %54 : vector<8xf32> to vector<8x1xf32>
    %56 = arith.subf %47, %55 : vector<8x1xf32>
    %cst_13 = arith.constant 0.000000e+00 : f32
    %57 = vector.broadcast %cst_13 : f32 to vector<8x1xf32>
    %58 = arith.cmpf ogt, %56, %57 : vector<8x1xf32>
    %cst_14 = arith.constant 1.000000e-30 : f32
    %59 = vector.broadcast %cst_14 : f32 to vector<8x1xf32>
    %60 = arith.maximumf %56, %59 : vector<8x1xf32>
    %61 = arith.divf %21, %60 : vector<8x1xf32>
    %cst_15 = arith.constant 0.000000e+00 : f32
    %62 = vector.broadcast %cst_15 : f32 to vector<8x1xf32>
    %63 = arith.select %58, %61, %62 : vector<8x1xi1>, vector<8x1xf32>
    %64 = vector.broadcast %55 : vector<8x1xf32> to vector<8x256xf32>
    %65 = arith.subf %53, %64 : vector<8x256xf32>
    %66 = vector.broadcast %63 : vector<8x1xf32> to vector<8x256xf32>
    %67 = arith.mulf %65, %66 : vector<8x256xf32>
    %68 = vector.broadcast %22 : vector<8x1xf32> to vector<8x256xf32>
    %69 = arith.addf %67, %68 : vector<8x256xf32>
    %70 = arith.addf %15, %69 : vector<8x256xf32>
    %71 = math.sqrt %70 : vector<8x256xf32>
    %c0_16 = arith.constant 0 : index
    %c0_17 = arith.constant 0 : index
    %72 = vector.load %arg3[%c0_16, %c0_17] : memref<8x256xf32, #tpu.memory_space<vmem>>, vector<8x256xf32>
    %73 = arith.mulf %71, %72 : vector<8x256xf32>
    %74 = arith.addf %70, %73 : vector<8x256xf32>
    %75 = vector.extract_strided_slice %0 {offsets = [0, 7], sizes = [8, 1], strides = [1, 1]} : vector<8x16xf32> to vector<8x1xf32>
    %76 = vector.extract_strided_slice %0 {offsets = [0, 8], sizes = [8, 1], strides = [1, 1]} : vector<8x16xf32> to vector<8x1xf32>
    %77 = vector.extract_strided_slice %0 {offsets = [0, 9], sizes = [8, 1], strides = [1, 1]} : vector<8x16xf32> to vector<8x1xf32>
    %78 = vector.extract_strided_slice %0 {offsets = [0, 10], sizes = [8, 1], strides = [1, 1]} : vector<8x16xf32> to vector<8x1xf32>
    %79 = vector.extract_strided_slice %0 {offsets = [0, 11], sizes = [8, 1], strides = [1, 1]} : vector<8x16xf32> to vector<8x1xf32>
    %80 = vector.extract_strided_slice %0 {offsets = [0, 12], sizes = [8, 1], strides = [1, 1]} : vector<8x16xf32> to vector<8x1xf32>
    %81 = vector.extract_strided_slice %0 {offsets = [0, 13], sizes = [8, 1], strides = [1, 1]} : vector<8x16xf32> to vector<8x1xf32>
    %82 = vector.broadcast %12 : vector<1x256xf32> to vector<8x256xf32>
    %83 = vector.broadcast %75 : vector<8x1xf32> to vector<8x256xf32>
    %84 = arith.subf %82, %83 : vector<8x256xf32>
    %85 = vector.broadcast %14 : vector<1x256xf32> to vector<8x256xf32>
    %86 = vector.broadcast %76 : vector<8x1xf32> to vector<8x256xf32>
    %87 = arith.subf %85, %86 : vector<8x256xf32>
    %88 = vector.broadcast %77 : vector<8x1xf32> to vector<8x256xf32>
    %89 = arith.mulf %88, %84 : vector<8x256xf32>
    %90 = arith.mulf %89, %84 : vector<8x256xf32>
    %cst_18 = arith.constant 2.000000e+00 : f32
    %91 = vector.broadcast %cst_18 : f32 to vector<8x1xf32>
    %92 = arith.mulf %91, %78 : vector<8x1xf32>
    %93 = vector.broadcast %92 : vector<8x1xf32> to vector<8x256xf32>
    %94 = arith.mulf %93, %84 : vector<8x256xf32>
    %95 = arith.mulf %94, %87 : vector<8x256xf32>
    %96 = arith.addf %90, %95 : vector<8x256xf32>
    %97 = vector.broadcast %79 : vector<8x1xf32> to vector<8x256xf32>
    %98 = arith.mulf %97, %87 : vector<8x256xf32>
    %99 = arith.mulf %98, %87 : vector<8x256xf32>
    %100 = arith.addf %96, %99 : vector<8x256xf32>
    %101 = arith.mulf %100, %100 : vector<8x256xf32>
    %cst_19 = arith.constant 0.000000e+00 : f32
    %102 = vector.broadcast %cst_19 : f32 to vector<8x256xf32>
    %103 = arith.subf %102, %101 : vector<8x256xf32>
    %104 = math.exp %103 : vector<8x256xf32>
    %cst_20 = arith.constant dense<0xFF800000> : vector<8xf32>
    %105 = vector.multi_reduction <maximumf>, %104, %cst_20 [1] : vector<8x256xf32> to vector<8xf32>
    %106 = vector.shape_cast %105 : vector<8xf32> to vector<8x1xf32>
    %cst_21 = arith.constant 9.99999997E-7 : f32
    %107 = vector.broadcast %cst_21 : f32 to vector<8x1xf32>
    %108 = arith.mulf %107, %106 : vector<8x1xf32>
    %109 = vector.broadcast %108 : vector<8x1xf32> to vector<8x256xf32>
    %110 = arith.cmpf olt, %104, %109 : vector<8x256xf32>
    %cst_22 = arith.constant 0.000000e+00 : f32
    %111 = vector.broadcast %cst_22 : f32 to vector<8x256xf32>
    %112 = arith.select %110, %111, %104 : vector<8x256xi1>, vector<8x256xf32>
    %cst_23 = arith.constant dense<0x7F800000> : vector<8xf32>
    %113 = vector.multi_reduction <minimumf>, %112, %cst_23 [1] : vector<8x256xf32> to vector<8xf32>
    %114 = vector.shape_cast %113 : vector<8xf32> to vector<8x1xf32>
    %115 = arith.subf %106, %114 : vector<8x1xf32>
    %cst_24 = arith.constant 0.000000e+00 : f32
    %116 = vector.broadcast %cst_24 : f32 to vector<8x1xf32>
    %117 = arith.cmpf ogt, %115, %116 : vector<8x1xf32>
    %cst_25 = arith.constant 1.000000e-30 : f32
    %118 = vector.broadcast %cst_25 : f32 to vector<8x1xf32>
    %119 = arith.maximumf %115, %118 : vector<8x1xf32>
    %120 = arith.divf %80, %119 : vector<8x1xf32>
    %cst_26 = arith.constant 0.000000e+00 : f32
    %121 = vector.broadcast %cst_26 : f32 to vector<8x1xf32>
    %122 = arith.select %117, %120, %121 : vector<8x1xi1>, vector<8x1xf32>
    %123 = vector.broadcast %114 : vector<8x1xf32> to vector<8x256xf32>
    %124 = arith.subf %112, %123 : vector<8x256xf32>
    %125 = vector.broadcast %122 : vector<8x1xf32> to vector<8x256xf32>
    %126 = arith.mulf %124, %125 : vector<8x256xf32>
    %127 = vector.broadcast %81 : vector<8x1xf32> to vector<8x256xf32>
    %128 = arith.addf %126, %127 : vector<8x256xf32>
    %129 = vector.extract_strided_slice %0 {offsets = [0, 14], sizes = [8, 1], strides = [1, 1]} : vector<8x16xf32> to vector<8x1xf32>
    %130 = vector.broadcast %129 : vector<8x1xf32> to vector<8x256xf32>
    %131 = arith.addf %74, %130 : vector<8x256xf32>
    %c0_27 = arith.constant 0 : index
    %c0_28 = arith.constant 0 : index
    %132 = vector.load %arg4[%c0_27, %c0_28] : memref<8x256xf32, #tpu.memory_space<vmem>>, vector<8x256xf32>
    %133 = arith.mulf %128, %132 : vector<8x256xf32>
    %134 = arith.addf %131, %133 : vector<8x256xf32>
    %cst_29 = arith.constant 0.000000e+00 : f32
    %135 = vector.broadcast %cst_29 : f32 to vector<8x256xf32>
    %136 = arith.maximumf %134, %135 : vector<8x256xf32>
    %c0_30 = arith.constant 0 : index
    %c0_31 = arith.constant 0 : index
    %137 = vector.load %arg5[%c0_30, %c0_31] : memref<8x256xf32, #tpu.memory_space<vmem>>, vector<8x256xf32>
    tpu.vector_store %arg5[%c0_30, %c0_31], %136 {strides = array<i32>} : memref<8x256xf32, #tpu.memory_space<vmem>>, vector<8x256xf32>,
    return
  }
  func.func @transform_0(%arg0: i32) -> (i32, i32) {
    %c0_i32 = arith.constant 0 : i32
    %c0_i32_0 = arith.constant 0 : i32
    return %arg0, %c0_i32 : i32, i32
  }
  func.func @transform_1(%arg0: i32) -> (i32, i32) {
    %c0_i32 = arith.constant 0 : i32
    %c0_i32_0 = arith.constant 0 : i32
    return %arg0, %c0_i32 : i32, i32
  }
  func.func @transform_2(%arg0: i32) -> (i32, i32) {
    %c0_i32 = arith.constant 0 : i32
    %c0_i32_0 = arith.constant 0 : i32
    return %arg0, %c0_i32 : i32, i32
  }
  func.func @transform_3(%arg0: i32) -> (i32, i32) {
    %c0_i32 = arith.constant 0 : i32
    %c0_i32_0 = arith.constant 0 : i32
    return %arg0, %c0_i32 : i32, i32
  }
  func.func @transform_4(%arg0: i32) -> (i32, i32) {
    %c0_i32 = arith.constant 0 : i32
    %c0_i32_0 = arith.constant 0 : i32
    return %arg0, %c0_i32 : i32, i32
  }
}

</mosaic_0001>

<llo_original>
// kernel: tpu_custom_call.1
$region0: #{tpu_custom_call.1}
  #allocation0 [shape = 'u32[]', space=smem, size = 0x4, offset = 0x4, fixed_abs, tag = 'smem constant byte address 0x4 - core index']
  #allocation1 [shape = 'u32[144,128]{1,0:T(1,128)}', space=vmem, size = 0x12000, scoped, tag = 'internal scratch']
  %s0 = inlined_call_operand.hbm [shape: f32[8,16], index: 0, kind: input, shape index: {}]
  %s1 = inlined_call_operand.hbm [shape: f32[8,256], index: 1, kind: input, shape index: {}]
  %s2 = inlined_call_operand.hbm [shape: f32[8,256], index: 2, kind: input, shape index: {}]
  %s3 = inlined_call_operand.hbm [shape: f32[8,256], index: 3, kind: input, shape index: {}]
  %s4 = inlined_call_operand.hbm [shape: f32[8,256], index: 4, kind: output, shape index: {}]
  %s5 = sld [smem:[#allocation0]]
  $region42: #{tpu_custom_call.1} parent=0
    _
  %s7 = ssub.s32 1, %s5
  %s8 = scalar_select 0, %s7, %s5
  $region1: #{tpu_custom_call.1} parent=0
    #allocation2 [shape = 'u8[4096]{0}', space=vmem, size = 0x1000, scoped, tag = 'input window, operand 0, single buffered']
    #allocation3 [shape = 's32[1]{0}', space=sflag, size = 0x4, scoped, tag = 'scoped memory for tpu_custom_call.1']
    #allocation4 [shape = 's32[1]{0}', space=sflag, size = 0x4, scoped, tag = 'scoped memory for tpu_custom_call.1']
    #allocation5 [shape = 'u8[8192]{0}', space=vmem, size = 0x2000, scoped, tag = 'input window, operand 1, single buffered']
    #allocation6 [shape = 's32[1]{0}', space=sflag, size = 0x4, scoped, tag = 'scoped memory for tpu_custom_call.1']
    #allocation7 [shape = 'u8[8192]{0}', space=vmem, size = 0x2000, scoped, tag = 'input window, operand 2, single buffered']
    #allocation8 [shape = 'u8[8192]{0}', space=vmem, size = 0x2000, scoped, tag = 'input window, operand 3, single buffered']
    #allocation9 [shape = 's32[1]{0}', space=sflag, size = 0x4, scoped, tag = 'scoped memory for tpu_custom_call.1']
    #allocation10 [shape = 'u8[8192]{0}', space=vmem, size = 0x2000, scoped, tag = 'output window, operand 0, single buffered']
    %9 = vsyncpa [#allocation3], 0
    %10 = vsyncpa [#allocation6], 0
    %11 = vsyncpa [#allocation9], 0
    %12 = vsyncpa [#allocation4], 0
    // Predicated region
    $region2: #{tpu_custom_call.1} parent=1 // pred_check
      _
    $region3: #{tpu_custom_call.1} parent=1 // pred_check_branch
      %14 = sbr.rel (0) target = $region5
    $region4: #{tpu_custom_call.1} parent=1 // pred_region
      %s16 = ssub.s32 128, 128
      %17 = vsyncadd [#allocation3], %s16
      %s19 = sshll.u32 [#allocation2], 4
      %s20 = int_to_ptr.vmem [resolvable:$true] %s19
      %22 = dma.hbm_to_vmem [thread:$0]  %s0, 128, %s20, [#allocation3]
    $region5: #{tpu_custom_call.1} parent=1 // pred_fallthru
      _
    // Predicated region
    $region6: #{tpu_custom_call.1} parent=1 // pred_check
      _
    $region7: #{tpu_custom_call.1} parent=1 // pred_check_branch
      %24 = sbr.rel (0) target = $region9
    $region8: #{tpu_custom_call.1} parent=1 // pred_region
      %s26 = ssub.s32 256, 256
      %27 = vsyncadd [#allocation6], %s26
      %s29 = sshll.u32 [#allocation5], 4
      %s30 = int_to_ptr.vmem [resolvable:$true] %s29
      %32 = dma.hbm_to_vmem [thread:$0]  %s1, 256, %s30, [#allocation6]
    $region9: #{tpu_custom_call.1} parent=1 // pred_fallthru
      _
    // Predicated region
    $region10: #{tpu_custom_call.1} parent=1 // pred_check
      _
    $region11: #{tpu_custom_call.1} parent=1 // pred_check_branch
      %34 = sbr.rel (0) target = $region13
    $region12: #{tpu_custom_call.1} parent=1 // pred_region
      %s36 = ssub.s32 256, 256
      %37 = vsyncadd [#allocation6], %s36
      %s39 = sshll.u32 [#allocation7], 4
      %s40 = int_to_ptr.vmem [resolvable:$true] %s39
      %42 = dma.hbm_to_vmem [thread:$0]  %s2, 256, %s40, [#allocation6]
    $region13: #{tpu_custom_call.1} parent=1 // pred_fallthru
      _
    // Predicated region
    $region14: #{tpu_custom_call.1} parent=1 // pred_check
      _
    $region15: #{tpu_custom_call.1} parent=1 // pred_check_branch
      %44 = sbr.rel (0) target = $region17
    $region16: #{tpu_custom_call.1} parent=1 // pred_region
      %s46 = ssub.s32 256, 256
      %47 = vsyncadd [#allocation9], %s46
      %s49 = sshll.u32 [#allocation8], 4
      %s50 = int_to_ptr.vmem [resolvable:$true] %s49
      %52 = dma.hbm_to_vmem [thread:$0]  %s3, 256, %s50, [#allocation9]
    $region17: #{tpu_custom_call.1} parent=1 // pred_fallthru
      _
    // Predicated region
    $region18: #{tpu_custom_call.1} parent=1 // pred_check
      _
    $region19: #{tpu_custom_call.1} parent=1 // pred_check_branch
      %54 = sbr.rel (0) target = $region21
    $region20: #{tpu_custom_call.1} parent=1 // pred_region
      %55 = dma.done [#allocation3], 128
    $region21: #{tpu_custom_call.1} parent=1 // pred_fallthru
      _
    // Predicated region
    $region22: #{tpu_custom_call.1} parent=1 // pred_check
      _
    $region23: #{tpu_custom_call.1} parent=1 // pred_check_branch
      %57 = sbr.rel (0) target = $region25
    $region24: #{tpu_custom_call.1} parent=1 // pred_region
      %58 = dma.done [#allocation6], 256
    $region25: #{tpu_custom_call.1} parent=1 // pred_fallthru
      _
    // Predicated region
    $region26: #{tpu_custom_call.1} parent=1 // pred_check
      _
    $region27: #{tpu_custom_call.1} parent=1 // pred_check_branch
      %60 = sbr.rel (0) target = $region29
    $region28: #{tpu_custom_call.1} parent=1 // pred_region
      %61 = dma.done [#allocation6], 256
    $region29: #{tpu_custom_call.1} parent=1 // pred_fallthru
      _
    // Predicated region
    $region30: #{tpu_custom_call.1} parent=1 // pred_check
      _
    $region31: #{tpu_custom_call.1} parent=1 // pred_check_branch
      %63 = sbr.rel (0) target = $region33
    $region32: #{tpu_custom_call.1} parent=1 // pred_region
      %64 = dma.done [#allocation9], 256
    $region33: #{tpu_custom_call.1} parent=1 // pred_fallthru
      _
    %v65 = vld [vmem:[#allocation2] sm:$0xff]
    %v66 = vlaneseq
    %v67 = vand.u32 %v66, 127
    %v68 = vadd.s32 %v67, 128
    %v69 = vcvt.s32.f32 %v67
    %v70 = vcvt.s32.f32 %v68
    %v71 = vadd.f32 %v69, 0.5
    %v72 = vadd.f32 %v70, 0.5
    %v73 = vmul.f32 %v71, 0.0625
    %v74 = vmul.f32 %v72, 0.0625
    %v75 = vfloor.f32 %v73
    %v76 = vfloor.f32 %v74
    %v77 = vmul.f32 %v75, 16.0
    %v78 = vmul.f32 %v76, 16.0
    %v79 = vsub.f32 %v69, %v77
    %v80 = vsub.f32 %v70, %v78
    %v81 = vsub.f32 %v79, 7.5
    %v82 = vsub.f32 %v80, 7.5
    %v83 = vsub.f32 %v75, 7.5
    %v84 = vsub.f32 %v76, 7.5
    %v85 = vld [vmem:[#allocation5] sm:$0xff]
    %v86 = vld [vmem:[#allocation5 + $0x8] sm:$0xff]
    %88 = vset.pattern.permute.xlu0 0
    %89 = vperm.xlu0 %88, %v65
    %v90 = vpop.permute.xlu0 %89
    %v92 = vsub.f32 %v81, %v90
    %v93 = vsub.f32 %v82, %v90
    %94 = vset.pattern.permute.xlu0 1
    %95 = vperm.xlu0 %94, %v65
    %v96 = vpop.permute.xlu0 %95
    %v98 = vsub.f32 %v83, %v96
    %v99 = vsub.f32 %v84, %v96
    %100 = vset.pattern.permute.xlu0 2
    %101 = vperm.xlu0 %100, %v65
    %v102 = vpop.permute.xlu0 %101
    %v104 = vmul.f32 %v102, %v92
    %v105 = vmul.f32 %v102, %v93
    %v106 = vmul.f32 %v104, %v92
    %v107 = vmul.f32 %v105, %v93
    %v108 = vmul.f32 %v65, 2.0
    %110 = vset.pattern.permute.xlu0 3
    %111 = vperm.xlu0 %110, %v108
    %v112 = vpop.permute.xlu0 %111
    %v114 = vmul.f32 %v112, %v92
    %v115 = vmul.f32 %v112, %v93
    %v116 = vmul.f32 %v114, %v98
    %v117 = vmul.f32 %v115, %v99
    %v118 = vadd.f32 %v106, %v116
    %v119 = vadd.f32 %v107, %v117
    %120 = vset.pattern.permute.xlu0 4
    %121 = vperm.xlu0 %120, %v65
    %v122 = vpop.permute.xlu0 %121
    %v124 = vmul.f32 %v122, %v98
    %v125 = vmul.f32 %v122, %v99
    %v126 = vmul.f32 %v124, %v98
    %v127 = vmul.f32 %v125, %v99
    %v128 = vadd.f32 %v118, %v126
    %v129 = vadd.f32 %v119, %v127
    %v130 = vmul.f32 %v128, %v128
    %v131 = vmul.f32 %v129, %v129
    %v132 = vsub.f32 0.0, %v130
    %v133 = vsub.f32 0.0, %v131
    %v134 = vmul.f32 %v132, 1.442695
    %v135 = vpow.pop %v134
    %v136 = vmul.f32 %v133, 1.442695
    %v137 = vpow.pop %v136
    %v138 = vmax.f32 %v135, %v137
    %139 = vmax.xlane.f32.xlu0 %v138
    %v140 = vpop.xlane.xlu0 %139
    %v141 = vmul.f32 %v140, 1e-06
    %vm142 = vcmp.lt.f32.partialorder %v135, %v141
    %vm143 = vcmp.lt.f32.partialorder %v137, %v141
    %v144 = vsel %vm142, 0.0, %v135
    %v145 = vsel %vm143, 0.0, %v137
    %v146 = vmin.f32 %v144, %v145
    %147 = vmin.xlane.f32.xlu0 %v146
    %v148 = vpop.xlane.xlu0 %147
    %v149 = vsub.f32 %v140, %v148
    %vm150 = vcmp.gt.f32.partialorder %v149, 0.0
    %v151 = vmax.f32 %v149, 1e-30
    %v152 = vrcp.pop %v151
    %v153 = vmul.f32 %v65, %v152
    %v154 = vsel %vm150, %v153, 0.0
    %v155 = vsub.f32 %v144, %v148
    %v156 = vsub.f32 %v145, %v148
    %158 = vset.pattern.permute.xlu0 5
    %159 = vperm.xlu0 %158, %v154
    %v160 = vpop.permute.xlu0 %159
    %v162 = vmul.f32 %v155, %v160
    %v163 = vmul.f32 %v156, %v160
    %164 = vset.pattern.permute.xlu0 6
    %165 = vperm.xlu0 %164, %v65
    %v166 = vpop.permute.xlu0 %165
    %v168 = vadd.f32 %v162, %v166
    %v169 = vadd.f32 %v163, %v166
    %v170 = vadd.f32 %v85, %v168
    %v171 = vadd.f32 %v86, %v169
    %v172 = vrsqrt.pop %v170
    %v173 = vmul.f32 %v170, %v172
    %vm174 = vcmp.eq.f32.partialorder %v170, inf
    %v175 = vsel %vm174, %v170, %v173
    %vm176 = vcmp.eq.f32.partialorder %v170, 0.0
    %v177 = vand.u32 %v170, 2147483648
    %v178 = vsel %vm176, %v177, %v175
    %v179 = vrsqrt.pop %v171
    %v180 = vmul.f32 %v171, %v179
    %vm181 = vcmp.eq.f32.partialorder %v171, inf
    %v182 = vsel %vm181, %v171, %v180
    %vm183 = vcmp.eq.f32.partialorder %v171, 0.0
    %v184 = vand.u32 %v171, 2147483648
    %v185 = vsel %vm183, %v184, %v182
    %v186 = vld [vmem:[#allocation7] sm:$0xff]
    %v187 = vld [vmem:[#allocation7 + $0x8] sm:$0xff]
    %v188 = vmul.f32 %v178, %v186
    %v189 = vmul.f32 %v185, %v187
    %v190 = vadd.f32 %v170, %v188
    %v191 = vadd.f32 %v171, %v189
    %192 = vset.pattern.permute.xlu0 7
    %193 = vperm.xlu0 %192, %v65
    %v194 = vpop.permute.xlu0 %193
    %v196 = vsub.f32 %v81, %v194
    %v197 = vsub.f32 %v82, %v194
    %198 = vset.pattern.permute.xlu0 8
    %199 = vperm.xlu0 %198, %v65
    %v200 = vpop.permute.xlu0 %199
    %v202 = vsub.f32 %v83, %v200
    %v203 = vsub.f32 %v84, %v200
    %204 = vset.pattern.permute.xlu0 9
    %205 = vperm.xlu0 %204, %v65
    %v206 = vpop.permute.xlu0 %205
    %v208 = vmul.f32 %v206, %v196
    %v209 = vmul.f32 %v206, %v197
    %v210 = vmul.f32 %v208, %v196
    %v211 = vmul.f32 %v209, %v197
    %212 = vset.pattern.permute.xlu0 10
    %213 = vperm.xlu0 %212, %v108
    %v214 = vpop.permute.xlu0 %213
    %v216 = vmul.f32 %v214, %v196
    %v217 = vmul.f32 %v214, %v197
    %v218 = vmul.f32 %v216, %v202
    %v219 = vmul.f32 %v217, %v203
    %v220 = vadd.f32 %v210, %v218
    %v221 = vadd.f32 %v211, %v219
    %222 = vset.pattern.permute.xlu0 11
    %223 = vperm.xlu0 %222, %v65
    %v224 = vpop.permute.xlu0 %223
    %v226 = vmul.f32 %v224, %v202
    %v227 = vmul.f32 %v224, %v203
    %v228 = vmul.f32 %v226, %v202
    %v229 = vmul.f32 %v227, %v203
    %v230 = vadd.f32 %v220, %v228
    %v231 = vadd.f32 %v221, %v229
    %v232 = vmul.f32 %v230, %v230
    %v233 = vmul.f32 %v231, %v231
    %v234 = vsub.f32 0.0, %v232
    %v235 = vsub.f32 0.0, %v233
    %v236 = vmul.f32 %v234, 1.442695
    %v237 = vpow.pop %v236
    %v238 = vmul.f32 %v235, 1.442695
    %v239 = vpow.pop %v238
    %v240 = vmax.f32 %v237, %v239
    %241 = vmax.xlane.f32.xlu0 %v240
    %v242 = vpop.xlane.xlu0 %241
    %v243 = vmul.f32 %v242, 1e-06
    %vm244 = vcmp.lt.f32.partialorder %v237, %v243
    %vm245 = vcmp.lt.f32.partialorder %v239, %v243
    %v246 = vsel %vm244, 0.0, %v237
    %v247 = vsel %vm245, 0.0, %v239
    %v248 = vmin.f32 %v246, %v247
    %249 = vmin.xlane.f32.xlu0 %v248
    %v250 = vpop.xlane.xlu0 %249
    %v251 = vsub.f32 %v242, %v250
    %vm252 = vcmp.gt.f32.partialorder %v251, 0.0
    %v253 = vmax.f32 %v251, 1e-30
    %v254 = vrcp.pop %v253
    %v255 = vmul.f32 %v65, %v254
    %v256 = vsel %vm252, %v255, 0.0
    %v257 = vsub.f32 %v246, %v250
    %v258 = vsub.f32 %v247, %v250
    %260 = vset.pattern.permute.xlu0 12
    %261 = vperm.xlu0 %260, %v256
    %v262 = vpop.permute.xlu0 %261
    %v264 = vmul.f32 %v257, %v262
    %v265 = vmul.f32 %v258, %v262
    %266 = vset.pattern.permute.xlu0 13
    %267 = vperm.xlu0 %266, %v65
    %v268 = vpop.permute.xlu0 %267
    %v270 = vadd.f32 %v264, %v268
    %v271 = vadd.f32 %v265, %v268
    %272 = vset.pattern.permute.xlu0 14
    %273 = vperm.xlu0 %272, %v65
    %v274 = vpop.permute.xlu0 %273
    %v276 = vadd.f32 %v190, %v274
    %v277 = vadd.f32 %v191, %v274
    %v278 = vld [vmem:[#allocation8] sm:$0xff]
    %v279 = vld [vmem:[#allocation8 + $0x8] sm:$0xff]
    %v280 = vmul.f32 %v270, %v278
    %v281 = vmul.f32 %v271, %v279
    %v282 = vadd.f32 %v276, %v280
    %v283 = vadd.f32 %v277, %v281
    %v284 = vmax.f32 %v282, 0.0
    %v285 = vmax.f32 %v283, 0.0
    %286 = vst [vmem:[#allocation10] sm:$0xff] %v284
    %287 = vst [vmem:[#allocation10 + $0x8] sm:$0xff] %v285
    // Predicated region
    $region34: #{tpu_custom_call.1} parent=1 // pred_check
      _
    $region35: #{tpu_custom_call.1} parent=1 // pred_check_branch
      %289 = sbr.rel (0) target = $region37
    $region36: #{tpu_custom_call.1} parent=1 // pred_region
      %s291 = ssub.s32 256, 256
      %292 = vsyncadd [#allocation4], %s291
      %s294 = sshll.u32 [#allocation10], 4
      %s295 = int_to_ptr.vmem [resolvable:$true] %s294
      %297 = dma.vmem_to_hbm [thread:$0]  %s295, 256, %s4, [#allocation4]
    $region37: #{tpu_custom_call.1} parent=1 // pred_fallthru
      _
    // Predicated region
    $region38: #{tpu_custom_call.1} parent=1 // pred_check
      _
    $region39: #{tpu_custom_call.1} parent=1 // pred_check_branch
      %299 = sbr.rel (0) target = $region41
    $region40: #{tpu_custom_call.1} parent=1 // pred_region
      %300 = dma.done [#allocation4], 256
    $region41: #{tpu_custom_call.1} parent=1 // pred_fallthru
      _
    %301 = vsyncpa [#allocation3], 1
    %302 = vsyncpa [#allocation6], 1
    %303 = vsyncpa [#allocation9], 1
    %304 = vsyncpa [#allocation4], 1

</llo_original>
